<compile_context>
chip_gen: v7x
topology: tpu7x:2x2x1
jax: 0.10.0
libtpu: 0.0.40
codegen_flags: <defaults>
</compile_context>

<pallas_src>
import functools

import jax
import jax.numpy as jnp
from jax import lax
from jax.experimental import pallas as pl
from jax.experimental.pallas import tpu as pltpu

PI = 3.141592653589793
_F32 = jnp.float32


def _round_up(x, m):
    return ((x + m - 1) // m) * m


# ---------------------------------------------------------------------------
# Shared in-kernel scoring math
# ---------------------------------------------------------------------------
def _dot_lastdim(a, b):
    """(Ra, D) x (Rb, D) -> (Ra, Rb); contraction over the last dim on the MXU."""
    return lax.dot_general(a, b, (((1,), (1,)), ((), ())),
                           preferred_element_type=jnp.float32)


def _score_block(head, relation, tail, *, model_name, mode, gamma, emb_range,
                 rel_is_trig=False):
    """Score a block.

    In neg-batch modes exactly one of head/tail is the big gathered block (it
    may stay in its native storage dtype, e.g. bf16); the other side and the
    relation are single fp32 rows.  Returns a lane-major (1, M) score row.
    """
    de_full = head.shape[1]
    ones_ent = jnp.ones((1, de_full), _F32)

    if model_name == 'TransE':
        h = head.astype(_F32)
        t = tail.astype(_F32)
        s = h + (relation - t) if mode == 'head-batch' else (h + relation) - t
        return gamma - _dot_lastdim(ones_ent, jnp.abs(s))

    if model_name == 'DistMult':
        if mode == 'head-batch':
            vec, other = relation * tail.astype(_F32), head
        else:
            vec, other = head.astype(_F32) * relation, tail
        if mode != 'single':
            # Whole contraction on the MXU; `other` keeps its storage dtype.
            return _dot_lastdim(vec.astype(other.dtype), other)
        return _dot_lastdim(ones_ent, vec * other.astype(_F32))

    if model_name == 'ComplEx':
        d = de_full // 2
        re_r, im_r = relation[:, :d], relation[:, d:]
        if mode == 'head-batch':
            t = tail.astype(_F32)
            re_t, im_t = t[:, :d], t[:, d:]
            re_v = re_r * re_t + im_r * im_t
            im_v = re_r * im_t - im_r * re_t
            other = head
        else:
            h = head.astype(_F32)
            re_h, im_h = h[:, :d], h[:, d:]
            re_v = re_h * re_r - im_h * im_r
            im_v = re_h * im_r + im_h * re_r
            other = tail
        if mode != 'single':
            # Two half-width MXU passes (no concatenated temporary).
            return (_dot_lastdim(re_v.astype(other.dtype), other[:, :d]) +
                    _dot_lastdim(im_v.astype(other.dtype), other[:, d:]))
        o = other.astype(_F32)
        return _dot_lastdim(jnp.ones((1, d), _F32),
                            re_v * o[:, :d] + im_v * o[:, d:])

    if model_name in ('RotatE', 'RotatEv2'):
        d = de_full // 2
        h = head.astype(_F32)
        t = tail.astype(_F32)
        re_h, im_h = h[:, :d], h[:, d:]
        re_t, im_t = t[:, :d], t[:, d:]
        if rel_is_trig:
            # relation == concat([cos(phase), sin(phase)]) precomputed once
            # per batch row in the wrapper (hoisted off the EUP hot path).
            dr = relation.shape[1] // 2
            re_r, im_r = relation[:, :dr], relation[:, dr:]
        else:
            phase = relation * (PI / emb_range)
            re_r, im_r = jnp.cos(phase), jnp.sin(phase)
        if model_name == 'RotatE':
            if mode == 'head-batch':
                re_s = re_r * re_t + im_r * im_t - re_h
                im_s = re_r * im_t - im_r * re_t - im_h
            else:
                re_s = re_h * re_r - im_h * im_r - re_t
                im_s = re_h * im_r + im_h * re_r - im_t
        else:  # RotatEv2
            re_r_h, re_r_t = re_r[:, :d], re_r[:, d:]
            im_r_h, im_r_t = im_r[:, :d], im_r[:, d:]
            re_s = (re_h * re_r_h - im_h * im_r_h) - (re_t * re_r_t - im_t * im_r_t)
            im_s = (re_h * im_r_h + im_h * re_r_h) - (re_t * im_r_t + im_t * re_r_t)
        mag = jnp.sqrt(re_s * re_s + im_s * im_s)
        return gamma - _dot_lastdim(jnp.ones((1, d), _F32), mag)

    if model_name == 'PairRE':
        dr = relation.shape[1] // 2
        r_h, r_t = relation[:, :dr], relation[:, dr:]

        def l2_normalize(x):
            x = x.astype(_F32)
            ss = _dot_lastdim(x * x, jnp.ones((1, x.shape[1]), _F32))  # MXU
            return x * lax.rsqrt(jnp.maximum(ss, 1e-24))               # EUP rsqrt

        s = l2_normalize(head) * r_h - l2_normalize(tail) * r_t
        return gamma - _dot_lastdim(ones_ent, jnp.abs(s))

    # TODO(synk): CompoundE / CompoundE3D_Complete_Mix_T_H need interleaved
    # (..., -1, 2) / (..., -1, 3) lane reshapes; not implemented in Pallas.
    raise NotImplementedError(model_name)


# ---------------------------------------------------------------------------
# Negative-batch kernel: fused gather, double-buffered across the N grid axis
# ---------------------------------------------------------------------------
def _neg_batch_kernel(idx_ref, pos_ref, rel_ref, ent_ref, out_ref, gbuf, sems,
                      *, model_name, mode, gamma, emb_range, tile_n, rel_is_trig):
    b = pl.program_id(0)
    nt = pl.program_id(1)
    n_tiles = pl.num_programs(1)
    slot = nt % 2

    def issue_tile(tile_idx, dst_slot):
        base = tile_idx * tile_n

        def body(j, carry):
            row = idx_ref[b, base + j]
            pltpu.make_async_copy(ent_ref.at[pl.ds(row, 1), :],
                                  gbuf.at[dst_slot, pl.ds(j, 1), :],
                                  sems.at[dst_slot]).start()
            return carry

        lax.fori_loop(0, tile_n, body, 0, unroll=8)

    # Prime slot 0 with this batch row's first tile.
    @pl.when(nt == 0)
    def _():
        issue_tile(0, 0)

    # Prefetch the NEXT tile into the other slot before any wait, so every
    # SMEM index read precedes the semaphore waits and the DMAs overlap the
    # wait + compute of the current tile.
    @pl.when(nt + 1 < n_tiles)
    def _():
        issue_tile(nt + 1, 1 - slot)

    # Drain the current slot.  The wait descriptor only needs the transfer
    # size, so no SMEM index reads happen after this point.
    def drain(j, carry):
        pltpu.make_async_copy(ent_ref.at[pl.ds(0, 1), :],
                              gbuf.at[slot, pl.ds(0, 1), :],
                              sems.at[slot]).wait()
        return carry

    lax.fori_loop(0, tile_n, drain, 0, unroll=8)

    neg = gbuf[slot]                         # (tile_n, De), native storage dtype
    pos = pos_ref[0]                         # (1, De)  float32
    rel = rel_ref[0]                         # (1, Dp)  float32 (trig payload for RotatE*)

    if mode == 'head-batch':
        head, tail = neg, pos
    else:
        head, tail = pos, neg

    scores = _score_block(head, rel, tail, model_name=model_name, mode=mode,
                          gamma=gamma, emb_range=emb_range,
                          rel_is_trig=rel_is_trig)        # (1, tile_n)
    out_ref[...] = scores[None]                           # (1, 1, tile_n)


def _pallas_neg_batch_score(entity_emb, pos_ent, relation, neg_idx, *,
                            model_name, mode, gamma, emb_range, tile_n=512):
    B, n_neg = neg_idx.shape
    De = entity_emb.shape[1]

    tile_n = min(int(tile_n), _round_up(n_neg, 128))
    tile_n = _round_up(tile_n, 128)
    n_pad = _round_up(n_neg, tile_n)
    n_tiles = n_pad // tile_n

    neg_idx = neg_idx.astype(jnp.int32)
    if n_pad != n_neg:
        neg_idx = jnp.pad(neg_idx, ((0, 0), (0, n_pad - n_neg)))  # pad w/ valid row 0

    rel_is_trig = model_name in ('RotatE', 'RotatEv2')
    rel_f32 = relation.astype(_F32)
    if rel_is_trig:
        # Hoist cos/sin out of the kernel: computed once per batch row instead
        # of once per (batch row, N tile).
        phase = rel_f32 * (PI / emb_range)
        rel_payload = jnp.concatenate([jnp.cos(phase), jnp.sin(phase)], axis=-1)
    else:
        rel_payload = rel_f32
    Dp = rel_payload.shape[1]

    pos3 = pos_ent.astype(_F32).reshape(B, 1, De)
    rel3 = rel_payload.reshape(B, 1, Dp)

    kernel = functools.partial(
        _neg_batch_kernel, model_name=model_name, mode=mode,
        gamma=float(gamma), emb_range=float(emb_range), tile_n=tile_n,
        rel_is_trig=rel_is_trig)

    itemsize = jnp.dtype(entity_emb.dtype).itemsize
    if model_name in ('RotatE', 'RotatEv2'):
        transc = B * n_pad * (De // 2)          # per-element sqrt
    elif model_name == 'PairRE':
        transc = 2 * B * n_pad                  # per-pair rsqrt
    else:
        transc = 0
    cost = pl.CostEstimate(
        flops=int(8 * B * n_pad * De),
        transcendentals=int(transc),
        bytes_accessed=int(itemsize * B * n_pad * De
                           + 4 * B * (De + Dp) + 8 * B * n_pad),
    )

    # VMEM budget: double-buffered gather block + f32 compute temporaries,
    # clamped to <= 32 MiB so it is safe on v7x (64 MiB/TC) too.
    est = (2 * tile_n * De * itemsize     # gbuf (both slots)
           + 8 * tile_n * De * 4          # f32 temporaries during scoring
           + 4 * tile_n * 4               # output blocks
           + 4 * (De + Dp) * 4)           # resident pos/rel blocks
    vmem_limit = int(min(max(2 * est, 16 * 1024 * 1024), 32 * 1024 * 1024))

    out = pl.pallas_call(
        kernel,
        out_shape=jax.ShapeDtypeStruct((B, 1, n_pad), jnp.float32),
        grid_spec=pltpu.PrefetchScalarGridSpec(
            # TODO(synk): at production B x N the (B, n_pad) int32 index array
            # should be delivered as per-tile SMEM blocks instead of a single
            # whole-array scalar prefetch (SMEM capacity limit).
            num_scalar_prefetch=1,                       # neg indices -> SMEM
            grid=(B, n_tiles),
            in_specs=[
                # positive-side entity row: resident across the N axis
                pl.BlockSpec((1, 1, De), lambda b, n, idx: (b, 0, 0)),
                # relation row (or its trig payload): resident across N
                pl.BlockSpec((1, 1, Dp), lambda b, n, idx: (b, 0, 0)),
                # full entity table stays in HBM; gathered manually via DMA
                pl.BlockSpec(memory_space=pl.ANY),
            ],
            out_specs=pl.BlockSpec((1, 1, tile_n), lambda b, n, idx: (b, 0, n)),
            scratch_shapes=[
                pltpu.VMEM((2, tile_n, De), entity_emb.dtype),  # double-buffered gather
                pltpu.SemaphoreType.DMA((2,)),                  # one sem per slot
            ],
        ),
        compiler_params=pltpu.CompilerParams(
            # N carries the prefetch-buffer state -> must stay un-sharded;
            # B stays megacore-parallel.
            dimension_semantics=("parallel", "arbitrary"),
            vmem_limit_bytes=vmem_limit,
        ),
        cost_estimate=cost,
    )(neg_idx, pos3, rel3, entity_emb)
    return out[:, 0, :n_neg]                              # (B, N)


# ---------------------------------------------------------------------------
# 'single' mode kernel: block the batch axis
# ---------------------------------------------------------------------------
def _single_kernel(head_ref, rel_ref, tail_ref, out_ref, *,
                   model_name, gamma, emb_range):
    head = head_ref[...].astype(_F32)   # (tile_b, De)
    rel = rel_ref[...].astype(_F32)     # (tile_b, Dr)
    tail = tail_ref[...].astype(_F32)   # (tile_b, De)
    out_ref[...] = _score_block(head, rel, tail, model_name=model_name,
                                mode='single', gamma=gamma,
                                emb_range=emb_range)       # (1, tile_b)


def _pallas_single_score(head, relation, tail, *, model_name, gamma, emb_range,
                         tile_b=512):
    B, De = head.shape
    Dr = relation.shape[1]
    tile_b = min(int(tile_b), _round_up(B, 8))
    b_pad = _round_up(B, tile_b)
    if b_pad != B:
        pad = ((0, b_pad - B), (0, 0))
        head = jnp.pad(head, pad)
        relation = jnp.pad(relation, pad)
        tail = jnp.pad(tail, pad)

    kernel = functools.partial(_single_kernel, model_name=model_name,
                               gamma=float(gamma), emb_range=float(emb_range))
    itemsize = jnp.dtype(head.dtype).itemsize
    if model_name in ('RotatE', 'RotatEv2'):
        transc = 2 * b_pad * Dr + b_pad * (De // 2)
    elif model_name == 'PairRE':
        transc = 2 * b_pad
    else:
        transc = 0
    cost = pl.CostEstimate(
        flops=int(8 * b_pad * De),
        transcendentals=int(transc),
        bytes_accessed=int(itemsize * (2 * b_pad * De + b_pad * Dr) + 4 * b_pad))

    est = 2 * (2 * De + Dr) * tile_b * itemsize + 8 * tile_b * De * 4
    vmem_limit = int(min(max(2 * est, 16 * 1024 * 1024), 32 * 1024 * 1024))

    out = pl.pallas_call(
        kernel,
        out_shape=jax.ShapeDtypeStruct((1, b_pad), jnp.float32),
        grid=(b_pad // tile_b,),
        in_specs=[
            pl.BlockSpec((tile_b, De), lambda i: (i, 0)),
            pl.BlockSpec((tile_b, Dr), lambda i: (i, 0)),
            pl.BlockSpec((tile_b, De), lambda i: (i, 0)),
        ],
        out_specs=pl.BlockSpec((1, tile_b), lambda i: (0, i)),   # lane-dense store
        compiler_params=pltpu.CompilerParams(
            dimension_semantics=("parallel",),
            vmem_limit_bytes=vmem_limit,
        ),
        cost_estimate=cost,
    )(head, relation, tail)
    return out[0, :B].reshape(B, 1)                       # (B, 1)


# ---------------------------------------------------------------------------
# Model wrapper (mirrors the PyTorch KGEModel forward semantics)
# ---------------------------------------------------------------------------
class KGEModel:
    def __init__(self, model_name, nentity, nrelation, hidden_dim, gamma,
                 evaluator=None, double_entity_embedding=False,
                 double_relation_embedding=False, triple_relation_embedding=False,
                 quad_relation_embedding=False, emb_dtype=jnp.float32, seed=0):
        if model_name not in ['TransE', 'DistMult', 'ComplEx', 'RotatE', 'PairRE',
                              'RotatEv2', 'CompoundE', 'CompoundE3D_Complete_Mix_T_H']:
            raise ValueError('model %s not supported' % model_name)
        if model_name == 'RotatE' and (not double_entity_embedding or double_relation_embedding):
            raise ValueError('RotatE should use --double_entity_embedding')
        if model_name == 'ComplEx' and (not double_entity_embedding or not double_relation_embedding):
            raise ValueError('ComplEx should use --double_entity_embedding and --double_relation_embedding')
        if model_name == 'PairRE' and (not double_relation_embedding):
            raise ValueError('PairRE should use --double_relation_embedding')
        if (model_name in ('CompoundE', 'CompoundE3D_Complete_Mix_T_H')
                and not triple_relation_embedding):
            raise ValueError('CompoundE should use --triple_relation_embedding')

        self.model_name = model_name
        self.nentity = nentity
        self.nrelation = nrelation
        self.hidden_dim = hidden_dim
        self.epsilon = 2.0
        self.gamma = float(gamma)
        self.embedding_range = (self.gamma + self.epsilon) / hidden_dim
        self.entity_dim = hidden_dim * 2 if double_entity_embedding else hidden_dim
        if double_relation_embedding:
            self.relation_dim = hidden_dim * 2
        elif triple_relation_embedding:
            self.relation_dim = hidden_dim * 3
        elif quad_relation_embedding:
            self.relation_dim = hidden_dim * 4
        else:
            self.relation_dim = hidden_dim
        self.evaluator = evaluator
        self.emb_dtype = emb_dtype

        key = jax.random.PRNGKey(seed)
        k1, k2 = jax.random.split(key)
        r = self.embedding_range
        self.entity_embedding = jax.random.uniform(
            k1, (nentity, self.entity_dim), jnp.float32, -r, r).astype(emb_dtype)
        self.relation_embedding = jax.random.uniform(
            k2, (nrelation, self.relation_dim), jnp.float32, -r, r).astype(emb_dtype)

    def forward(self, sample, mode='single', tile_n=512, tile_b=512):
        common = dict(model_name=self.model_name, gamma=self.gamma,
                      emb_range=self.embedding_range)
        if mode == 'single':
            head = jnp.take(self.entity_embedding, sample[:, 0], axis=0)
            relation = jnp.take(self.relation_embedding, sample[:, 1], axis=0)
            tail = jnp.take(self.entity_embedding, sample[:, 2], axis=0)
            return _pallas_single_score(head, relation, tail, tile_b=tile_b, **common)
        if mode == 'head-batch':
            tail_part, head_part = sample
            pos_ent = jnp.take(self.entity_embedding, tail_part[:, 2], axis=0)
            relation = jnp.take(self.relation_embedding, tail_part[:, 1], axis=0)
            return _pallas_neg_batch_score(self.entity_embedding, pos_ent, relation,
                                           head_part, mode='head-batch',
                                           tile_n=tile_n, **common)
        if mode == 'tail-batch':
            head_part, tail_part = sample
            pos_ent = jnp.take(self.entity_embedding, head_part[:, 0], axis=0)
            relation = jnp.take(self.relation_embedding, head_part[:, 1], axis=0)
            return _pallas_neg_batch_score(self.entity_embedding, pos_ent, relation,
                                           tail_part, mode='tail-batch',
                                           tile_n=tile_n, **common)
        raise ValueError('mode %s not supported' % mode)

    __call__ = forward


# ---------------------------------------------------------------------------
# Pure-JAX reference (mirrors the torch formulas exactly) + test harness
# ---------------------------------------------------------------------------
def _reference_score(head, relation, tail, mode, model_name, gamma, emb_range):
    head = head.astype(jnp.float32)
    relation = relation.astype(jnp.float32)
    tail = tail.astype(jnp.float32)
    if model_name == 'TransE':
        s = head + (relation - tail) if mode == 'head-batch' else head + relation - tail
        return gamma - jnp.sum(jnp.abs(s), axis=2)
    if model_name == 'DistMult':
        s = head * (relation * tail) if mode == 'head-batch' else head * relation * tail
        return jnp.sum(s, axis=2)
    if model_name == 'ComplEx':
        re_h, im_h = jnp.split(head, 2, axis=2)
        re_r, im_r = jnp.split(relation, 2, axis=2)
        re_t, im_t = jnp.split(tail, 2, axis=2)
        if mode == 'head-batch':
            re_s = re_r * re_t + im_r * im_t
            im_s = re_r * im_t - im_r * re_t
            s = re_h * re_s + im_h * im_s
        else:
            re_s = re_h * re_r - im_h * im_r
            im_s = re_h * im_r + im_h * re_r
            s = re_s * re_t + im_s * im_t
        return jnp.sum(s, axis=2)
    if model_name in ('RotatE', 'RotatEv2'):
        re_h, im_h = jnp.split(head, 2, axis=2)
        re_t, im_t = jnp.split(tail, 2, axis=2)
        phase = relation / (emb_range / PI)
        re_r, im_r = jnp.cos(phase), jnp.sin(phase)
        if model_name == 'RotatE':
            if mode == 'head-batch':
                re_s = re_r * re_t + im_r * im_t - re_h
                im_s = re_r * im_t - im_r * re_t - im_h
            else:
                re_s = re_h * re_r - im_h * im_r - re_t
                im_s = re_h * im_r + im_h * re_r - im_t
        else:
            re_rh, re_rt = jnp.split(re_r, 2, axis=2)
            im_rh, im_rt = jnp.split(im_r, 2, axis=2)
            re_s = (re_h * re_rh - im_h * im_rh) - (re_t * re_rt - im_t * im_rt)
            im_s = (re_h * im_rh + im_h * re_rh) - (re_t * im_rt + im_t * re_rt)
        score = jnp.sqrt(re_s * re_s + im_s * im_s)
        return gamma - jnp.sum(score, axis=2)
    if model_name == 'PairRE':
        r_h, r_t = jnp.split(relation, 2, axis=2)
        hn = head / jnp.maximum(jnp.sqrt(jnp.sum(head * head, axis=-1, keepdims=True)), 1e-12)
        tn = tail / jnp.maximum(jnp.sqrt(jnp.sum(tail * tail, axis=-1, keepdims=True)), 1e-12)
        s = hn * r_h - tn * r_t
        return gamma - jnp.sum(jnp.abs(s), axis=2)
    raise NotImplementedError(model_name)


def _gather_like_torch(model, pos, neg, mode):
    E = model.entity_embedding.astype(jnp.float32)
    R = model.relation_embedding.astype(jnp.float32)
    B = pos.shape[0]
    if mode == 'single':
        return (jnp.take(E, pos[:, 0], axis=0)[:, None, :],
                jnp.take(R, pos[:, 1], axis=0)[:, None, :],
                jnp.take(E, pos[:, 2], axis=0)[:, None, :])
    if mode == 'tail-batch':
        return (jnp.take(E, pos[:, 0], axis=0)[:, None, :],
                jnp.take(R, pos[:, 1], axis=0)[:, None, :],
                jnp.take(E, neg.reshape(-1), axis=0).reshape(B, neg.shape[1], -1))
    return (jnp.take(E, neg.reshape(-1), axis=0).reshape(B, neg.shape[1], -1),
            jnp.take(R, pos[:, 1], axis=0)[:, None, :],
            jnp.take(E, pos[:, 2], axis=0)[:, None, :])


if __name__ == "__main__":
    nentity, nrelation, hidden = 80, 8, 128
    B, NEG = 2, 200            # NEG deliberately not a multiple of the 128-lane tile
    gamma = 12.0

    key = jax.random.PRNGKey(0)
    kh, kr, kt, kn = jax.random.split(key, 4)
    pos = jnp.stack([
        jax.random.randint(kh, (B,), 0, nentity),
        jax.random.randint(kr, (B,), 0, nrelation),
        jax.random.randint(kt, (B,), 0, nentity),
    ], axis=1).astype(jnp.int32)                                   # (B, 3)
    neg = jax.random.randint(kn, (B, NEG), 0, nentity).astype(jnp.int32)   # (B, NEG)

    configs = [
        ('RotatE', dict(double_entity_embedding=True),
         ['single', 'tail-batch', 'head-batch']),
        ('TransE', dict(), ['head-batch']),
        ('DistMult', dict(), ['tail-batch']),
        ('ComplEx', dict(double_entity_embedding=True, double_relation_embedding=True),
         ['head-batch']),
        ('PairRE', dict(double_relation_embedding=True), ['tail-batch']),
        ('RotatEv2', dict(double_entity_embedding=True, double_relation_embedding=True),
         ['tail-batch']),
    ]

    for name, flags, modes in configs:
        model = KGEModel(name, nentity, nrelation, hidden, gamma, seed=1, **flags)
        for mode in modes:
            if mode == 'single':
                got = jax.block_until_ready(model.forward(pos, mode='single'))
            else:
                # tile_n=128 -> two N tiles, exercising the double-buffered gather path
                got = jax.block_until_ready(
                    model.forward((pos, neg), mode=mode, tile_n=128))
            h, r, t = _gather_like_torch(model, pos, neg, mode)
            ref = _reference_score(h, r, t, mode, name, model.gamma,
                                   model.embedding_range)
            assert got.shape == ref.shape, (name, mode, got.shape, ref.shape)
            max_err = float(jnp.max(jnp.abs(got - ref)))
            assert jnp.allclose(got, ref, rtol=1e-4, atol=1e-4), (name, mode, max_err)

    # bfloat16-in-HBM storage paths (fp32 accumulation inside the kernel;
    # default tile_n -> single-tile path also covered)
    model_bf16 = KGEModel('RotatE', nentity, nrelation, hidden, gamma,
                          double_entity_embedding=True,
                          emb_dtype=jnp.bfloat16, seed=1)
    got_bf16 = jax.block_until_ready(model_bf16.forward((pos, neg), mode='tail-batch'))
    assert got_bf16.shape == (B, NEG)
    assert bool(jnp.all(jnp.isfinite(got_bf16)))

    model_bf16_dm = KGEModel('DistMult', nentity, nrelation, hidden, gamma,
                             emb_dtype=jnp.bfloat16, seed=2)
    got_dm = jax.block_until_ready(model_bf16_dm.forward((pos, neg), mode='tail-batch'))
    h, r, t = _gather_like_torch(model_bf16_dm, pos, neg, 'tail-batch')
    ref_dm = _reference_score(h, r, t, 'tail-batch', 'DistMult', gamma,
                              model_bf16_dm.embedding_range)
    assert jnp.allclose(got_dm, ref_dm, rtol=2e-2, atol=2e-2), \
        float(jnp.max(jnp.abs(got_dm - ref_dm)))

    print("KERNEL_OK")
</pallas_src>

<mosaic_0001>
module attributes {stable_mosaic.version = 11 : i64} {
  func.func @_single_kernel(%arg0: i32, %arg1: memref<8x256xf32, #tpu.memory_space<vmem>>, %arg2: memref<8x128xf32, #tpu.memory_space<vmem>>, %arg3: memref<8x256xf32, #tpu.memory_space<vmem>>, %arg4: memref<1x8xf32, #tpu.memory_space<vmem>>) attributes {dimension_semantics = [#tpu.dimension_semantics<parallel>], iteration_bounds = array<i64: 1>, scalar_prefetch = 0 : i64, scratch_operands = 0 : i64, tpu.core_type = #tpu.core_type<tc>, window_params = [{transform_indices = @transform_0, window_bounds = array<i64: 8, 256>}, {transform_indices = @transform_1, window_bounds = array<i64: 8, 128>}, {transform_indices = @transform_2, window_bounds = array<i64: 8, 256>}, {transform_indices = @transform_3, window_bounds = array<i64: 1, 8>}]} {
    %c0 = arith.constant 0 : index
    %c0_0 = arith.constant 0 : index
    %0 = vector.load %arg1[%c0, %c0_0] : memref<8x256xf32, #tpu.memory_space<vmem>>, vector<8x256xf32>
    %c0_1 = arith.constant 0 : index
    %c0_2 = arith.constant 0 : index
    %1 = vector.load %arg2[%c0_1, %c0_2] : memref<8x128xf32, #tpu.memory_space<vmem>>, vector<8x128xf32>
    %c0_3 = arith.constant 0 : index
    %c0_4 = arith.constant 0 : index
    %2 = vector.load %arg3[%c0_3, %c0_4] : memref<8x256xf32, #tpu.memory_space<vmem>>, vector<8x256xf32>
    %3 = vector.extract_strided_slice %0 {offsets = [0, 0], sizes = [8, 128], strides = [1, 1]} : vector<8x256xf32> to vector<8x128xf32>
    %4 = vector.extract_strided_slice %0 {offsets = [0, 128], sizes = [8, 128], strides = [1, 1]} : vector<8x256xf32> to vector<8x128xf32>
    %5 = vector.extract_strided_slice %2 {offsets = [0, 0], sizes = [8, 128], strides = [1, 1]} : vector<8x256xf32> to vector<8x128xf32>
    %6 = vector.extract_strided_slice %2 {offsets = [0, 128], sizes = [8, 128], strides = [1, 1]} : vector<8x256xf32> to vector<8x128xf32>
    %cst = arith.constant 28.7231331 : f32
    %7 = vector.broadcast %cst : f32 to vector<8x128xf32>
    %8 = arith.mulf %1, %7 : vector<8x128xf32>
    %9 = math.cos %8 : vector<8x128xf32>
    %10 = math.sin %8 : vector<8x128xf32>
    %11 = arith.mulf %3, %9 : vector<8x128xf32>
    %12 = arith.mulf %4, %10 : vector<8x128xf32>
    %13 = arith.subf %11, %12 : vector<8x128xf32>
    %14 = arith.subf %13, %5 : vector<8x128xf32>
    %15 = arith.mulf %3, %10 : vector<8x128xf32>
    %16 = arith.mulf %4, %9 : vector<8x128xf32>
    %17 = arith.addf %15, %16 : vector<8x128xf32>
    %18 = arith.subf %17, %6 : vector<8x128xf32>
    %19 = arith.mulf %14, %14 : vector<8x128xf32>
    %20 = arith.mulf %18, %18 : vector<8x128xf32>
    %21 = arith.addf %19, %20 : vector<8x128xf32>
    %22 = math.sqrt %21 : vector<8x128xf32>
    %cst_5 = arith.constant 1.000000e+00 : f32
    %23 = vector.broadcast %cst_5 : f32 to vector<1x128xf32>
    %cst_6 = arith.constant dense<0.000000e+00> : vector<1x8xf32>
    %24 = tpu.matmul %23, %22, %cst_6 {dimension_numbers = #tpu.dot_dimension_numbers<[1], [1], [0], [0], [0, 0, 1, 0], [], []>} : vector<1x128xf32>, vector<8x128xf32>, vector<1x8xf32> -> vector<1x8xf32>
    %cst_7 = arith.constant 1.200000e+01 : f32
    %25 = vector.broadcast %cst_7 : f32 to vector<1x8xf32>
    %26 = arith.subf %25, %24 : vector<1x8xf32>
    %c0_8 = arith.constant 0 : index
    %c0_9 = arith.constant 0 : index
    %27 = vector.load %arg4[%c0_8, %c0_9] : memref<1x8xf32, #tpu.memory_space<vmem>>, vector<1x8xf32>
    tpu.vector_store %arg4[%c0_8, %c0_9], %26 {strides = array<i32>} : memref<1x8xf32, #tpu.memory_space<vmem>>, vector<1x8xf32>,
    return
  }
  func.func @transform_0(%arg0: i32) -> (i32, i32) {
    %c0_i32 = arith.constant 0 : i32
    %c0_i32_0 = arith.constant 0 : i32
    return %arg0, %c0_i32 : i32, i32
  }
  func.func @transform_1(%arg0: i32) -> (i32, i32) {
    %c0_i32 = arith.constant 0 : i32
    %c0_i32_0 = arith.constant 0 : i32
    return %arg0, %c0_i32 : i32, i32
  }
  func.func @transform_2(%arg0: i32) -> (i32, i32) {
    %c0_i32 = arith.constant 0 : i32
    %c0_i32_0 = arith.constant 0 : i32
    return %arg0, %c0_i32 : i32, i32
  }
  func.func @transform_3(%arg0: i32) -> (i32, i32) {
    %c0_i32 = arith.constant 0 : i32
    %c0_i32_0 = arith.constant 0 : i32
    return %c0_i32, %arg0 : i32, i32
  }
}

</mosaic_0001>

<llo_original>
// kernel: tpu_custom_call.1
$region0: #{tpu_custom_call.1}
  #allocation0 [shape = 'u32[]', space=smem, size = 0x4, offset = 0x4, fixed_abs, tag = 'smem constant byte address 0x4 - core index']
  #allocation1 [shape = 'u32[144,128]{1,0:T(1,128)}', space=vmem, size = 0x12000, scoped, tag = 'internal scratch']
  %s0 = inlined_call_operand.hbm [shape: f32[8,256], index: 0, kind: input, shape index: {}]
  %s1 = inlined_call_operand.hbm [shape: f32[8,128], index: 1, kind: input, shape index: {}]
  %s2 = inlined_call_operand.hbm [shape: f32[8,256], index: 2, kind: input, shape index: {}]
  %s3 = inlined_call_operand.hbm [shape: f32[1,8], index: 3, kind: output, shape index: {}]
  %s4 = sld [smem:[#allocation0]]
  $region34: #{tpu_custom_call.1} parent=0
    _
  %s6 = ssub.s32 1, %s4
  %s7 = scalar_select 0, %s6, %s4
  $region1: #{tpu_custom_call.1} parent=0
    #allocation2 [shape = 'u8[8192]{0}', space=vmem, size = 0x2000, scoped, tag = 'input window, operand 0, single buffered']
    #allocation3 [shape = 's32[1]{0}', space=sflag, size = 0x4, scoped, tag = 'scoped memory for tpu_custom_call.1']
    #allocation4 [shape = 's32[1]{0}', space=sflag, size = 0x4, scoped, tag = 'scoped memory for tpu_custom_call.1']
    #allocation5 [shape = 'u8[4096]{0}', space=vmem, size = 0x1000, scoped, tag = 'input window, operand 1, single buffered']
    #allocation6 [shape = 's32[1]{0}', space=sflag, size = 0x4, scoped, tag = 'scoped memory for tpu_custom_call.1']
    #allocation7 [shape = 'u8[8192]{0}', space=vmem, size = 0x2000, scoped, tag = 'input window, operand 2, single buffered']
    #allocation8 [shape = 'u8[512]{0}', space=vmem, size = 0x400, scoped, tag = 'output window, operand 0, single buffered']
    %8 = vsyncpa [#allocation3], 0
    %9 = vsyncpa [#allocation6], 0
    %10 = vsyncpa [#allocation4], 0
    // Predicated region
    $region2: #{tpu_custom_call.1} parent=1 // pred_check
      _
    $region3: #{tpu_custom_call.1} parent=1 // pred_check_branch
      %12 = sbr.rel (0) target = $region5
    $region4: #{tpu_custom_call.1} parent=1 // pred_region
      %s14 = ssub.s32 256, 256
      %15 = vsyncadd [#allocation3], %s14
      %s17 = sshll.u32 [#allocation2], 4
      %s18 = int_to_ptr.vmem [resolvable:$true] %s17
      %20 = dma.hbm_to_vmem [thread:$0]  %s0, 256, %s18, [#allocation3]
    $region5: #{tpu_custom_call.1} parent=1 // pred_fallthru
      _
    // Predicated region
    $region6: #{tpu_custom_call.1} parent=1 // pred_check
      _
    $region7: #{tpu_custom_call.1} parent=1 // pred_check_branch
      %22 = sbr.rel (0) target = $region9
    $region8: #{tpu_custom_call.1} parent=1 // pred_region
      %s24 = ssub.s32 128, 128
      %25 = vsyncadd [#allocation6], %s24
      %s27 = sshll.u32 [#allocation5], 4
      %s28 = int_to_ptr.vmem [resolvable:$true] %s27
      %30 = dma.hbm_to_vmem [thread:$0]  %s1, 128, %s28, [#allocation6]
    $region9: #{tpu_custom_call.1} parent=1 // pred_fallthru
      _
    // Predicated region
    $region10: #{tpu_custom_call.1} parent=1 // pred_check
      _
    $region11: #{tpu_custom_call.1} parent=1 // pred_check_branch
      %32 = sbr.rel (0) target = $region13
    $region12: #{tpu_custom_call.1} parent=1 // pred_region
      %s34 = ssub.s32 256, 256
      %35 = vsyncadd [#allocation6], %s34
      %s37 = sshll.u32 [#allocation7], 4
      %s38 = int_to_ptr.vmem [resolvable:$true] %s37
      %40 = dma.hbm_to_vmem [thread:$0]  %s2, 256, %s38, [#allocation6]
    $region13: #{tpu_custom_call.1} parent=1 // pred_fallthru
      _
    // Predicated region
    $region14: #{tpu_custom_call.1} parent=1 // pred_check
      _
    $region15: #{tpu_custom_call.1} parent=1 // pred_check_branch
      %42 = sbr.rel (0) target = $region17
    $region16: #{tpu_custom_call.1} parent=1 // pred_region
      %43 = dma.done [#allocation3], 256
    $region17: #{tpu_custom_call.1} parent=1 // pred_fallthru
      _
    // Predicated region
    $region18: #{tpu_custom_call.1} parent=1 // pred_check
      _
    $region19: #{tpu_custom_call.1} parent=1 // pred_check_branch
      %45 = sbr.rel (0) target = $region21
    $region20: #{tpu_custom_call.1} parent=1 // pred_region
      %46 = dma.done [#allocation6], 128
    $region21: #{tpu_custom_call.1} parent=1 // pred_fallthru
      _
    // Predicated region
    $region22: #{tpu_custom_call.1} parent=1 // pred_check
      _
    $region23: #{tpu_custom_call.1} parent=1 // pred_check_branch
      %48 = sbr.rel (0) target = $region25
    $region24: #{tpu_custom_call.1} parent=1 // pred_region
      %49 = dma.done [#allocation6], 256
    $region25: #{tpu_custom_call.1} parent=1 // pred_fallthru
      _
    %v50 = vld [vmem:[#allocation2] sm:$0xff]
    %v51 = vld [vmem:[#allocation2 + $0x8] sm:$0xff]
    %v52 = vld [vmem:[#allocation5] sm:$0xff]
    %v53 = vld [vmem:[#allocation7] sm:$0xff]
    %v54 = vld [vmem:[#allocation7 + $0x8] sm:$0xff]
    %v55 = vmul.f32 %v52, 28.723133
    %v56 = vand.u32 2147483647, %v55
    %vm57 = vcmp.le.f32.partialorder %v56, 0.7853982
    %vm58 = vcmp.lt.s32.totalorder %v55, 0
    %v59 = vand.u32 %v55, 2139095040
    %v60 = vshrl.u32 %v59, 23
    %v61 = vsub.s32 %v60, 127
    %v62 = vand.u32 2147483647, %v55
    %v63 = vand.u32 %v62, 8388607
    %v64 = vor.u32 %v63, 8388608
    %v65 = vsub.s32 0, %v64
    %v66 = vadd.s32 %v61, 1
    %vm67 = vcmp.gt.s32.totalorder %v66, 0
    %v68 = vsel %vm67, %v66, 0
    %v69 = vshrl.u32 %v68, 5
    %v70 = vand.u32 %v68, 31
    %v71 = vsub.s32 32, %v70
    %v72 = vshrl.u32 683565275, %v71
    %v73 = vshll.u32 683565275, %v70
    %v74 = vshrl.u32 2475754826, %v71
    %v75 = vor.u32 %v73, %v74
    %v76 = vshll.u32 2475754826, %v70
    %v77 = vshrl.u32 2131351028, %v71
    %v78 = vor.u32 %v76, %v77
    %v79 = vshll.u32 2131351028, %v70
    %v80 = vshrl.u32 2102212464, %v71
    %v81 = vor.u32 %v79, %v80
    %v82 = vshll.u32 2102212464, %v70
    %v83 = vshrl.u32 920167782, %v71
    %v84 = vor.u32 %v82, %v83
    %v85 = vshll.u32 920167782, %v70
    %v86 = vshrl.u32 1326507024, %v71
    %v87 = vor.u32 %v85, %v86
    %vm88 = vcmp.lt.s32.totalorder %v69, 1
    %vm89 = vcmp.lt.s32.totalorder %v69, 2
    %vm90 = vcmp.lt.s32.totalorder %v69, 3
    %vm91 = vcmp.lt.s32.totalorder %v69, 4
    %v92 = vsel %vm88, %v72, %v75
    %v93 = vsel %vm91, %v81, 2102212464
    %v94 = vsel %vm90, %v78, %v93
    %v95 = vsel %vm89, %v92, %v94
    %v96 = vsel %vm88, %v75, %v78
    %v97 = vsel %vm91, %v84, 920167782
    %v98 = vsel %vm90, %v81, %v97
    %v99 = vsel %vm89, %v96, %v98
    %v100 = vsel %vm88, %v78, %v81
    %v101 = vsel %vm91, %v87, 1326507024
    %v102 = vsel %vm90, %v84, %v101
    %v103 = vsel %vm89, %v100, %v102
    %v104 = vshll.u32 %v64, 8
    %v105 = vmul.u32.u64.compose %v104, %v103
    %v106 = vextract.low.u32 %v105
    %v107 = vextract.high.u32 %v105
    %v108 = vmul.u32.u64.compose %v104, %v99
    %v109 = vextract.low.u32 %v108
    %v110 = vextract.high.u32 %v108
    %v111 = vmul.u32 %v104, %v95
    %v112 = vadd.s32 %v107, %v109
    %vm113 = vc.u32 %v107, %v109
    %v114 = vadd.s32 %v110, 1
    %v115 = vsel %vm113, %v114, %v110
    %v116 = vadd.s32 %v111, %v115
    %v117 = vadd.s32 %v116, 536870912
    %v118 = vshrl.u32 %v117, 30
    %v119 = vshll.u32 %v118, 30
    %v120 = vsub.s32 %v116, %v119
    %vm121 = vcmp.lt.s32.totalorder %v120, 0
    %v122 = vsub.s32 0, %v120
    %v123 = vsel %vm121, %v122, %v120
    %v124 = vclz %v123
    %v125 = vsub.s32 %v124, 2
    %vm126 = vcmp.gt.s32.totalorder 0, %v125
    %v127 = vsel %vm126, 0, %v125
    %v128 = vsub.s32 32, %v127
    %v129 = vshll.u32 %v120, %v127
    %v130 = vshrl.u32 %v112, %v128
    %v131 = vor.u32 %v129, %v130
    %v132 = vsub.s32 4294967266, %v127
    %v133 = vadd.s32 %v132, 127
    %v134 = vshll.u32 %v133, 23
    %v135 = vor.u32 4788187, %v134
    %v136 = vand.u32 2147483647, %v135
    %v138 = vcvt.s32.f32 %v131
    %v139 = vmul.f32 %v138, %v136
    %v140 = vxor.u32 %v139, 2147483648
    %v141 = vsel %vm58, %v140, %v139
    %v142 = vsub.s32 4, %v118
    %v143 = vsel %vm58, %v142, %v118
    %v144 = vsel %vm57, %v55, %v141
    %v145 = vsel %vm57, 0, %v143
    %v146 = vcosq.f32.pop %v144
    %v147 = vsinq.f32.pop %v144
    %vm148 = vweird.f32 %v55
    %v149 = vand.u32 %v145, 3
    %vm150 = vcmp.lt.s32.totalorder %v149, 2
    %vm151 = vcmp.eq.s32.totalorder %v149, 0
    %v152 = vxor.u32 %v147, 2147483648
    %v153 = vsel %vm151, %v146, %v152
    %vm154 = vcmp.eq.s32.totalorder %v149, 2
    %v155 = vxor.u32 %v146, 2147483648
    %v156 = vsel %vm154, %v155, %v147
    %v157 = vsel %vm150, %v153, %v156
    %v158 = vsel %vm148, nan, %v157
    %v159 = vand.u32 2147483647, %v55
    %vm160 = vcmp.le.f32.partialorder %v159, 0.7853982
    %vm161 = vcmp.lt.s32.totalorder %v55, 0
    %v162 = vand.u32 %v55, 2139095040
    %v163 = vshrl.u32 %v162, 23
    %v164 = vsub.s32 %v163, 127
    %v165 = vand.u32 2147483647, %v55
    %v166 = vand.u32 %v165, 8388607
    %v167 = vor.u32 %v166, 8388608
    %v168 = vsub.s32 0, %v167
    %v169 = vadd.s32 %v164, 1
    %vm170 = vcmp.gt.s32.totalorder %v169, 0
    %v171 = vsel %vm170, %v169, 0
    %v172 = vshrl.u32 %v171, 5
    %v173 = vand.u32 %v171, 31
    %v174 = vsub.s32 32, %v173
    %v175 = vshrl.u32 683565275, %v174
    %v176 = vshll.u32 683565275, %v173
    %v177 = vshrl.u32 2475754826, %v174
    %v178 = vor.u32 %v176, %v177
    %v179 = vshll.u32 2475754826, %v173
    %v180 = vshrl.u32 2131351028, %v174
    %v181 = vor.u32 %v179, %v180
    %v182 = vshll.u32 2131351028, %v173
    %v183 = vshrl.u32 2102212464, %v174
    %v184 = vor.u32 %v182, %v183
    %v185 = vshll.u32 2102212464, %v173
    %v186 = vshrl.u32 920167782, %v174
    %v187 = vor.u32 %v185, %v186
    %v188 = vshll.u32 920167782, %v173
    %v189 = vshrl.u32 1326507024, %v174
    %v190 = vor.u32 %v188, %v189
    %vm191 = vcmp.lt.s32.totalorder %v172, 1
    %vm192 = vcmp.lt.s32.totalorder %v172, 2
    %vm193 = vcmp.lt.s32.totalorder %v172, 3
    %vm194 = vcmp.lt.s32.totalorder %v172, 4
    %v195 = vsel %vm191, %v175, %v178
    %v196 = vsel %vm194, %v184, 2102212464
    %v197 = vsel %vm193, %v181, %v196
    %v198 = vsel %vm192, %v195, %v197
    %v199 = vsel %vm191, %v178, %v181
    %v200 = vsel %vm194, %v187, 920167782
    %v201 = vsel %vm193, %v184, %v200
    %v202 = vsel %vm192, %v199, %v201
    %v203 = vsel %vm191, %v181, %v184
    %v204 = vsel %vm194, %v190, 1326507024
    %v205 = vsel %vm193, %v187, %v204
    %v206 = vsel %vm192, %v203, %v205
    %v207 = vshll.u32 %v167, 8
    %v208 = vmul.u32.u64.compose %v207, %v206
    %v209 = vextract.low.u32 %v208
    %v210 = vextract.high.u32 %v208
    %v211 = vmul.u32.u64.compose %v207, %v202
    %v212 = vextract.low.u32 %v211
    %v213 = vextract.high.u32 %v211
    %v214 = vmul.u32 %v207, %v198
    %v215 = vadd.s32 %v210, %v212
    %vm216 = vc.u32 %v210, %v212
    %v217 = vadd.s32 %v213, 1
    %v218 = vsel %vm216, %v217, %v213
    %v219 = vadd.s32 %v214, %v218
    %v220 = vadd.s32 %v219, 536870912
    %v221 = vshrl.u32 %v220, 30
    %v222 = vshll.u32 %v221, 30
    %v223 = vsub.s32 %v219, %v222
    %vm224 = vcmp.lt.s32.totalorder %v223, 0
    %v225 = vsub.s32 0, %v223
    %v226 = vsel %vm224, %v225, %v223
    %v227 = vclz %v226
    %v228 = vsub.s32 %v227, 2
    %vm229 = vcmp.gt.s32.totalorder 0, %v228
    %v230 = vsel %vm229, 0, %v228
    %v231 = vsub.s32 32, %v230
    %v232 = vshll.u32 %v223, %v230
    %v233 = vshrl.u32 %v215, %v231
    %v234 = vor.u32 %v232, %v233
    %v235 = vsub.s32 4294967266, %v230
    %v236 = vadd.s32 %v235, 127
    %v237 = vshll.u32 %v236, 23
    %v238 = vor.u32 4788187, %v237
    %v239 = vand.u32 2147483647, %v238
    %v241 = vcvt.s32.f32 %v234
    %v242 = vmul.f32 %v241, %v239
    %v243 = vxor.u32 %v242, 2147483648
    %v244 = vsel %vm161, %v243, %v242
    %v245 = vsub.s32 4, %v221
    %v246 = vsel %vm161, %v245, %v221
    %v247 = vsel %vm160, %v55, %v244
    %v248 = vsel %vm160, 0, %v246
    %v249 = vcosq.f32.pop %v247
    %v250 = vsinq.f32.pop %v247
    %vm251 = vweird.f32 %v55
    %v252 = vadd.s32 %v248, 3
    %v253 = vand.u32 %v252, 3
    %vm254 = vcmp.lt.s32.totalorder %v253, 2
    %vm255 = vcmp.eq.s32.totalorder %v253, 0
    %v256 = vxor.u32 %v250, 2147483648
    %v257 = vsel %vm255, %v249, %v256
    %vm258 = vcmp.eq.s32.totalorder %v253, 2
    %v259 = vxor.u32 %v249, 2147483648
    %v260 = vsel %vm258, %v259, %v250
    %v261 = vsel %vm254, %v257, %v260
    %v262 = vsel %vm251, nan, %v261
    %v263 = vmul.f32 %v50, %v158
    %v264 = vmul.f32 %v51, %v262
    %v265 = vsub.f32 %v263, %v264
    %v266 = vsub.f32 %v265, %v53
    %v267 = vmul.f32 %v50, %v262
    %v268 = vmul.f32 %v51, %v158
    %v269 = vadd.f32 %v267, %v268
    %v270 = vsub.f32 %v269, %v54
    %v271 = vmul.f32 %v266, %v266
    %v272 = vmul.f32 %v270, %v270
    %v273 = vadd.f32 %v271, %v272
    %v274 = vrsqrt.pop %v273
    %v275 = vmul.f32 %v273, %v274
    %vm276 = vcmp.eq.f32.partialorder %v273, inf
    %v277 = vsel %vm276, %v273, %v275
    %vm278 = vcmp.eq.f32.partialorder %v273, 0.0
    %v279 = vand.u32 %v273, 2147483648
    %v280 = vsel %vm278, %v279, %v277
    %281 = vmatprep.subr.mxu0 0.0
    %282 = vmatpush1.xpose.msra.mxu0 %v280
    %283 = vmatprep.subr.mxu0 0.0
    %284 = vmatpush1.xpose.msra.mxu0 0.0
    %285 = vmatprep.subr.mxu0 0.0
    %286 = vmatpush1.xpose.msra.mxu0 0.0
    %287 = vmatprep.subr.mxu0 0.0
    %288 = vmatpush1.xpose.msra.mxu0 0.0
    %289 = vmatprep.subr.mxu0 0.0
    %290 = vmatpush1.xpose.msra.mxu0 0.0
    %291 = vmatprep.subr.mxu0 0.0
    %292 = vmatpush1.xpose.msra.mxu0 0.0
    %293 = vmatprep.subr.mxu0 0.0
    %294 = vmatpush1.xpose.msra.mxu0 0.0
    %295 = vmatprep.subr.mxu0 0.0
    %296 = vmatpush1.xpose.msra.mxu0 0.0
    %297 = vmatprep.subr.mxu0 0.0
    %298 = vmatpush1.xpose.msra.mxu0 0.0
    %299 = vmatprep.subr.mxu0 0.0
    %300 = vmatpush1.xpose.msra.mxu0 0.0
    %301 = vmatprep.subr.mxu0 0.0
    %302 = vmatpush1.xpose.msra.mxu0 0.0
    %303 = vmatprep.subr.mxu0 0.0
    %304 = vmatpush1.xpose.msra.mxu0 0.0
    %305 = vmatprep.subr.mxu0 0.0
    %306 = vmatpush1.xpose.msra.mxu0 0.0
    %307 = vmatprep.subr.mxu0 0.0
    %308 = vmatpush1.xpose.msra.mxu0 0.0
    %309 = vmatprep.subr.mxu0 0.0
    %310 = vmatpush1.xpose.msra.mxu0 0.0
    %311 = vmatprep.subr.mxu0 0.0
    %312 = vmatpush1.xpose.msra.mxu0 0.0
    %313 = vmatprep.subr.mxu0 0.0
    %314 = vmatpush1.xpose.msra.mxu0 0.0
    %315 = vmatprep.subr.mxu0 0.0
    %316 = vmatpush1.xpose.msra.mxu0 0.0
    %317 = vmatprep.subr.mxu0 0.0
    %318 = vmatpush1.xpose.msra.mxu0 0.0
    %319 = vmatprep.subr.mxu0 0.0
    %320 = vmatpush1.xpose.msra.mxu0 0.0
    %321 = vmatprep.subr.mxu0 0.0
    %322 = vmatpush1.xpose.msra.mxu0 0.0
    %323 = vmatprep.subr.mxu0 0.0
    %324 = vmatpush1.xpose.msra.mxu0 0.0
    %325 = vmatprep.subr.mxu0 0.0
    %326 = vmatpush1.xpose.msra.mxu0 0.0
    %327 = vmatprep.subr.mxu0 0.0
    %328 = vmatpush1.xpose.msra.mxu0 0.0
    %329 = vmatprep.subr.mxu0 0.0
    %330 = vmatpush1.xpose.msra.mxu0 0.0
    %331 = vmatprep.subr.mxu0 0.0
    %332 = vmatpush1.xpose.msra.mxu0 0.0
    %333 = vmatprep.subr.mxu0 0.0
    %334 = vmatpush1.xpose.msra.mxu0 0.0
    %335 = vmatprep.subr.mxu0 0.0
    %336 = vmatpush1.xpose.msra.mxu0 0.0
    %337 = vmatprep.subr.mxu0 0.0
    %338 = vmatpush1.xpose.msra.mxu0 0.0
    %339 = vmatprep.subr.mxu0 0.0
    %340 = vmatpush1.xpose.msra.mxu0 0.0
    %341 = vmatprep.subr.mxu0 0.0
    %342 = vmatpush1.xpose.msra.mxu0 0.0
    %343 = vmatprep.subr.mxu0 0.0
    %344 = vmatpush1.xpose.msra.mxu0 0.0
    %345 = vmatprep.mubr.f32.mxu0 0.0
    %346 = vmatmul.mubr.f32.gmra.mrb[0].mxu0 1.0
    %v347 = vpop.f32.mrb[0].mxu0
    %v348 = vadd.f32 0.0, %v347
    %v349 = vpop.f32.mrb[0].mxu0
    %350 = vdwg.mxu0
    %v351 = vsub.f32 12.0, %v348
    %vm352 = vcmask 57344
    %353 = vst.msk [vmem:[#allocation8] sm:$0x1] %vm352, %v351
    // Predicated region
    $region26: #{tpu_custom_call.1} parent=1 // pred_check
      _
    $region27: #{tpu_custom_call.1} parent=1 // pred_check_branch
      %355 = sbr.rel (0) target = $region29
    $region28: #{tpu_custom_call.1} parent=1 // pred_region
      %s357 = ssub.s32 16, 16
      %358 = vsyncadd [#allocation4], %s357
      %s360 = sshll.u32 [#allocation8], 4
      %s361 = int_to_ptr.vmem [resolvable:$true] %s360
      %363 = dma.vmem_to_hbm [thread:$0]  %s361, 16, %s3, [#allocation4]
    $region29: #{tpu_custom_call.1} parent=1 // pred_fallthru
      _
    // Predicated region
    $region30: #{tpu_custom_call.1} parent=1 // pred_check
      _
    $region31: #{tpu_custom_call.1} parent=1 // pred_check_branch
      %365 = sbr.rel (0) target = $region33
    $region32: #{tpu_custom_call.1} parent=1 // pred_region
      %366 = dma.done [#allocation4], 16
    $region33: #{tpu_custom_call.1} parent=1 // pred_fallthru
      _
    %367 = vsyncpa [#allocation3], 1
    %368 = vsyncpa [#allocation6], 1
    %369 = vsyncpa [#allocation4], 1

</llo_original>
